<compile_context>
chip_gen: v5e
topology: v5e:2x2
jax: 0.10.0
libtpu: 0.0.40
codegen_flags: <defaults>
</compile_context>

<pallas_src>
import jax
import jax.numpy as jnp
from jax.experimental import pallas as pl
from jax.experimental.pallas import tpu as pltpu


def _round_up(x, m):
    return ((x + m - 1) // m) * m


def pg_model_kernel(x_ref, w1_ref, b1_ref, w2_ref, b2_ref, out_ref):
    x = x_ref[...]                                                     # (TILE_B, Din)

    # affine1: x @ W1 + b1 -> (TILE_B, 64)   (MXU matmul, f32 accumulate)
    h = jnp.dot(x, w1_ref[...], preferred_element_type=jnp.float32) + b1_ref[...]

    # dropout (eval mode) == identity; relu on the VPU
    h = jnp.maximum(h, 0.0)

    # affine2: h @ W2 + b2 -> (TILE_B, Dout)
    s = jnp.dot(h, w2_ref[...], preferred_element_type=jnp.float32) + b2_ref[...]

    # softmax over dim=1 (last axis); reciprocal goes to the EUP slot.
    s = s - jnp.max(s, axis=-1, keepdims=True)
    e = jnp.exp(s)
    inv = pl.reciprocal(jnp.sum(e, axis=-1, keepdims=True), approx=False)
    out_ref[...] = (e * inv).astype(out_ref.dtype)


def _choose_tile_b(batch, tile_b):
    """Pick a batch tile: big per-step DMAs, but >=2 grid steps when B >= 16
    so the parallel batch axis gives both v7x TensorCores work."""
    if tile_b is None:
        tile_b = min(8192, pl.cdiv(batch, 2))
    tile_b = _round_up(max(int(tile_b), 1), 8)          # sublane multiple
    return min(tile_b, _round_up(batch, 8))             # never bigger than needed


def pg_model_forward(x, w1, b1, w2, b2, *, tile_b=None):
    """x: (B, Din); w1: (Din, 64); b1: (64,); w2: (64, Dout); b2: (Dout,).

    Weights are stored pre-transposed as (in_features, out_features) so the
    kernel does plain x @ W + b on the MXU. Weights are kept in f32; x is
    streamed in whatever dtype it already has (no wrapper-side casts/pads).
    """
    B, d_in = x.shape
    d_hid = w2.shape[0]
    d_out = w2.shape[1]

    tile_b = _choose_tile_b(B, tile_b)
    grid = (pl.cdiv(B, tile_b),)                         # ragged tail handled by Pallas

    itemsize_x = jnp.dtype(x.dtype).itemsize
    cost = pl.CostEstimate(
        flops=2 * B * (d_in * d_hid + d_hid * d_out),
        transcendentals=B * d_out,
        bytes_accessed=(itemsize_x * B * d_in                    # x stream in
                        + 4 * B * d_out                          # softmax out
                        + 4 * d_in * d_hid                       # W1
                        + 4 * (d_hid + d_hid * d_out + d_out)),  # b1, W2, b2
    )

    return pl.pallas_call(
        pg_model_kernel,
        out_shape=jax.ShapeDtypeStruct((B, d_out), jnp.float32),
        grid_spec=pltpu.PrefetchScalarGridSpec(
            num_scalar_prefetch=0,
            grid=grid,
            in_specs=[
                pl.BlockSpec((tile_b, d_in), lambda i: (i, 0)),   # x tile (pipelined)
                pl.BlockSpec((d_in, d_hid), lambda i: (0, 0)),    # W1 (resident)
                pl.BlockSpec((1, d_hid), lambda i: (0, 0)),       # b1 (resident)
                pl.BlockSpec((d_hid, d_out), lambda i: (0, 0)),   # W2 (resident)
                pl.BlockSpec((1, d_out), lambda i: (0, 0)),       # b2 (resident)
            ],
            out_specs=pl.BlockSpec((tile_b, d_out), lambda i: (i, 0)),
        ),
        compiler_params=pltpu.CompilerParams(
            dimension_semantics=("parallel",),        # shard batch over v7x's 2 TCs
            vmem_limit_bytes=32 * 1024 * 1024,        # ~2x peak usage at tile_b=8192
        ),
        cost_estimate=cost,
    )(x, w1, b1.reshape(1, -1), w2, b2.reshape(1, -1))


def init_params(key, input_dim, hidden_dim, output_dim):
    """Deterministic init mimicking nn.Linear's U(-1/sqrt(fan_in), 1/sqrt(fan_in))."""
    k1, k2, k3, k4 = jax.random.split(key, 4)
    bound1 = 1.0 / jnp.sqrt(jnp.float32(input_dim))
    bound2 = 1.0 / jnp.sqrt(jnp.float32(hidden_dim))
    w1 = jax.random.uniform(k1, (input_dim, hidden_dim), jnp.float32, -bound1, bound1)
    b1 = jax.random.uniform(k2, (hidden_dim,), jnp.float32, -bound1, bound1)
    w2 = jax.random.uniform(k3, (hidden_dim, output_dim), jnp.float32, -bound2, bound2)
    b2 = jax.random.uniform(k4, (output_dim,), jnp.float32, -bound2, bound2)
    return w1, b1, w2, b2


def _ref_forward(x, w1, b1, w2, b2):
    h = jnp.maximum(x @ w1 + b1, 0.0)
    return jax.nn.softmax(h @ w2 + b2, axis=1)


if __name__ == "__main__":
    # Small shapes consistent with the module: batch=8, input_dim=16,
    # hidden=64 (fixed by the module), output_dim=4.
    B, D_IN, D_HID, D_OUT = 8, 16, 64, 4

    key = jax.random.PRNGKey(0)
    kx, kp = jax.random.split(key)
    x = jax.random.normal(kx, (B, D_IN), jnp.float32)
    w1, b1, w2, b2 = init_params(kp, D_IN, D_HID, D_OUT)

    out = pg_model_forward(x, w1, b1, w2, b2)
    out = jax.block_until_ready(out)

    ref = _ref_forward(x, w1, b1, w2, b2)
    assert out.shape == (B, D_OUT)
    assert jnp.allclose(out, ref, atol=1e-5, rtol=1e-5)
    assert jnp.allclose(jnp.sum(out, axis=1), 1.0, atol=1e-5)

    # Exercise the auto-tiled multi-step pipeline (grid >= 2, no padding pass).
    B2 = 2000
    x2 = jax.random.normal(jax.random.PRNGKey(1), (B2, D_IN), jnp.float32)
    out2 = jax.block_until_ready(pg_model_forward(x2, w1, b1, w2, b2))
    ref2 = _ref_forward(x2, w1, b1, w2, b2)
    assert out2.shape == (B2, D_OUT)
    assert jnp.allclose(out2, ref2, atol=1e-5, rtol=1e-5)

    # Exercise the ragged final block path (B not a multiple of tile_b):
    # grid = cdiv(2000, 512) = 4 with a 464-row valid tail block.
    out3 = jax.block_until_ready(pg_model_forward(x2, w1, b1, w2, b2, tile_b=512))
    assert out3.shape == (B2, D_OUT)
    assert jnp.allclose(out3, ref2, atol=1e-5, rtol=1e-5)

    print("KERNEL_OK")
</pallas_src>

<mosaic_0001>
module attributes {stable_mosaic.version = 11 : i64} {
  func.func @pg_model_kernel(%arg0: i32, %arg1: memref<8x16xf32, #tpu.memory_space<vmem>>, %arg2: memref<16x64xf32, #tpu.memory_space<vmem>>, %arg3: memref<1x64xf32, #tpu.memory_space<vmem>>, %arg4: memref<64x4xf32, #tpu.memory_space<vmem>>, %arg5: memref<1x4xf32, #tpu.memory_space<vmem>>, %arg6: memref<8x4xf32, #tpu.memory_space<vmem>>) attributes {dimension_semantics = [#tpu.dimension_semantics<parallel>], iteration_bounds = array<i64: 1>, scalar_prefetch = 0 : i64, scratch_operands = 0 : i64, tpu.core_type = #tpu.core_type<tc>, window_params = [{transform_indices = @transform_0, window_bounds = array<i64: 8, 16>}, {pipeline_mode = #tpu.pipeline_mode<synchronous>, transform_indices = @transform_1, window_bounds = array<i64: 16, 64>}, {pipeline_mode = #tpu.pipeline_mode<synchronous>, transform_indices = @transform_2, window_bounds = array<i64: 1, 64>}, {pipeline_mode = #tpu.pipeline_mode<synchronous>, transform_indices = @transform_3, window_bounds = array<i64: 64, 4>}, {pipeline_mode = #tpu.pipeline_mode<synchronous>, transform_indices = @transform_4, window_bounds = array<i64: 1, 4>}, {transform_indices = @transform_5, window_bounds = array<i64: 8, 4>}]} {
    %c0 = arith.constant 0 : index
    %c0_0 = arith.constant 0 : index
    %0 = vector.load %arg1[%c0, %c0_0] : memref<8x16xf32, #tpu.memory_space<vmem>>, vector<8x16xf32>
    %c0_1 = arith.constant 0 : index
    %c0_2 = arith.constant 0 : index
    %1 = vector.load %arg2[%c0_1, %c0_2] : memref<16x64xf32, #tpu.memory_space<vmem>>, vector<16x64xf32>
    %cst = arith.constant dense<0.000000e+00> : vector<8x64xf32>
    %2 = tpu.matmul %0, %1, %cst {dimension_numbers = #tpu.dot_dimension_numbers<[1], [0], [0], [1], [0, 0, 1, 1], [], []>} : vector<8x16xf32>, vector<16x64xf32>, vector<8x64xf32> -> vector<8x64xf32>
    %c0_3 = arith.constant 0 : index
    %c0_4 = arith.constant 0 : index
    %3 = vector.load %arg3[%c0_3, %c0_4] : memref<1x64xf32, #tpu.memory_space<vmem>>, vector<1x64xf32>
    %4 = vector.broadcast %3 : vector<1x64xf32> to vector<8x64xf32>
    %5 = arith.addf %2, %4 : vector<8x64xf32>
    %cst_5 = arith.constant 0.000000e+00 : f32
    %6 = vector.broadcast %cst_5 : f32 to vector<8x64xf32>
    %7 = arith.maximumf %5, %6 : vector<8x64xf32>
    %c0_6 = arith.constant 0 : index
    %c0_7 = arith.constant 0 : index
    %8 = vector.load %arg4[%c0_6, %c0_7] : memref<64x4xf32, #tpu.memory_space<vmem>>, vector<64x4xf32>
    %cst_8 = arith.constant dense<0.000000e+00> : vector<8x4xf32>
    %9 = tpu.matmul %7, %8, %cst_8 {dimension_numbers = #tpu.dot_dimension_numbers<[1], [0], [0], [1], [0, 0, 1, 1], [], []>} : vector<8x64xf32>, vector<64x4xf32>, vector<8x4xf32> -> vector<8x4xf32>
    %c0_9 = arith.constant 0 : index
    %c0_10 = arith.constant 0 : index
    %10 = vector.load %arg5[%c0_9, %c0_10] : memref<1x4xf32, #tpu.memory_space<vmem>>, vector<1x4xf32>
    %11 = vector.broadcast %10 : vector<1x4xf32> to vector<8x4xf32>
    %12 = arith.addf %9, %11 : vector<8x4xf32>
    %cst_11 = arith.constant dense<0xFF800000> : vector<8xf32>
    %13 = vector.multi_reduction <maximumf>, %12, %cst_11 [1] : vector<8x4xf32> to vector<8xf32>
    %14 = vector.shape_cast %13 : vector<8xf32> to vector<8x1xf32>
    %15 = vector.broadcast %14 : vector<8x1xf32> to vector<8x4xf32>
    %16 = arith.subf %12, %15 : vector<8x4xf32>
    %17 = math.exp %16 : vector<8x4xf32>
    %cst_12 = arith.constant dense<0.000000e+00> : vector<8xf32>
    %18 = vector.multi_reduction <add>, %17, %cst_12 [1] : vector<8x4xf32> to vector<8xf32>
    %19 = vector.shape_cast %18 : vector<8xf32> to vector<8x1xf32>
    %20 = tpu.reciprocal %19 : vector<8x1xf32> -> vector<8x1xf32>
    %21 = vector.broadcast %20 : vector<8x1xf32> to vector<8x4xf32>
    %22 = arith.mulf %17, %21 : vector<8x4xf32>
    %c0_13 = arith.constant 0 : index
    %c0_14 = arith.constant 0 : index
    %23 = vector.load %arg6[%c0_13, %c0_14] : memref<8x4xf32, #tpu.memory_space<vmem>>, vector<8x4xf32>
    tpu.vector_store %arg6[%c0_13, %c0_14], %22 {strides = array<i32>} : memref<8x4xf32, #tpu.memory_space<vmem>>, vector<8x4xf32>,
    return
  }
  func.func @transform_0(%arg0: i32) -> (i32, i32) {
    %c0_i32 = arith.constant 0 : i32
    %c0_i32_0 = arith.constant 0 : i32
    return %arg0, %c0_i32 : i32, i32
  }
  func.func @transform_1(%arg0: i32) -> (i32, i32) {
    %c0_i32 = arith.constant 0 : i32
    %c0_i32_0 = arith.constant 0 : i32
    %c0_i32_1 = arith.constant 0 : i32
    return %c0_i32, %c0_i32_0 : i32, i32
  }
  func.func @transform_2(%arg0: i32) -> (i32, i32) {
    %c0_i32 = arith.constant 0 : i32
    %c0_i32_0 = arith.constant 0 : i32
    %c0_i32_1 = arith.constant 0 : i32
    return %c0_i32, %c0_i32_0 : i32, i32
  }
  func.func @transform_3(%arg0: i32) -> (i32, i32) {
    %c0_i32 = arith.constant 0 : i32
    %c0_i32_0 = arith.constant 0 : i32
    %c0_i32_1 = arith.constant 0 : i32
    return %c0_i32, %c0_i32_0 : i32, i32
  }
  func.func @transform_4(%arg0: i32) -> (i32, i32) {
    %c0_i32 = arith.constant 0 : i32
    %c0_i32_0 = arith.constant 0 : i32
    %c0_i32_1 = arith.constant 0 : i32
    return %c0_i32, %c0_i32_0 : i32, i32
  }
  func.func @transform_5(%arg0: i32) -> (i32, i32) {
    %c0_i32 = arith.constant 0 : i32
    %c0_i32_0 = arith.constant 0 : i32
    return %arg0, %c0_i32 : i32, i32
  }
}

</mosaic_0001>

<llo_original>
// kernel: tpu_custom_call.1
$region0: #{tpu_custom_call.1}
  #allocation0 [shape = 'u32[]', space=smem, size = 0x4, offset = 0x4, fixed_abs, tag = 'smem constant byte address 0x4 - core index']
  #allocation1 [shape = 'u32[72,128]{1,0:T(1,128)}', space=vmem, size = 0x9000, scoped, tag = 'internal scratch']
  %s0 = inlined_call_operand.vmem [shape: f32[8,16], index: 0, kind: input, shape index: {}]
  %s1 = inlined_call_operand.vmem [shape: f32[16,64], index: 1, kind: input, shape index: {}]
  %s2 = inlined_call_operand.vmem [shape: f32[1,64], index: 2, kind: input, shape index: {}]
  %s3 = inlined_call_operand.vmem [shape: f32[64,4], index: 3, kind: input, shape index: {}]
  %s4 = inlined_call_operand.vmem [shape: f32[1,4], index: 4, kind: input, shape index: {}]
  %s5 = inlined_call_operand.vmem [shape: f32[8,4], index: 5, kind: output, shape index: {}]
  %s6 = sld [smem:[#allocation0]]
  $region30: #{tpu_custom_call.1} parent=0
    _
  %s8 = ssub.s32 1, %s6
  %s9 = scalar_select 0, %s8, %s6
  // Predicated region
  $region2: #{tpu_custom_call.1} parent=0 // pred_check
    _
  $region3: #{tpu_custom_call.1} parent=0 // pred_check_branch
    %11 = sbr.rel (0) target = $region5
  $region4: #{tpu_custom_call.1} parent=0 // pred_region
    _
  $region5: #{tpu_custom_call.1} parent=0 // pred_fallthru
    _
  // Predicated region
  $region6: #{tpu_custom_call.1} parent=0 // pred_check
    _
  $region7: #{tpu_custom_call.1} parent=0 // pred_check_branch
    %13 = sbr.rel (0) target = $region9
  $region8: #{tpu_custom_call.1} parent=0 // pred_region
    _
  $region9: #{tpu_custom_call.1} parent=0 // pred_fallthru
    _
  // Predicated region
  $region10: #{tpu_custom_call.1} parent=0 // pred_check
    _
  $region11: #{tpu_custom_call.1} parent=0 // pred_check_branch
    %15 = sbr.rel (0) target = $region13
  $region12: #{tpu_custom_call.1} parent=0 // pred_region
    _
  $region13: #{tpu_custom_call.1} parent=0 // pred_fallthru
    _
  // Predicated region
  $region14: #{tpu_custom_call.1} parent=0 // pred_check
    _
  $region15: #{tpu_custom_call.1} parent=0 // pred_check_branch
    %17 = sbr.rel (0) target = $region17
  $region16: #{tpu_custom_call.1} parent=0 // pred_region
    _
  $region17: #{tpu_custom_call.1} parent=0 // pred_fallthru
    _
  // Predicated region
  $region18: #{tpu_custom_call.1} parent=0 // pred_check
    _
  $region19: #{tpu_custom_call.1} parent=0 // pred_check_branch
    %19 = sbr.rel (0) target = $region21
  $region20: #{tpu_custom_call.1} parent=0 // pred_region
    _
  $region21: #{tpu_custom_call.1} parent=0 // pred_fallthru
    _
  %v20 = vld [vmem:[%s0] sm:$0xff]
  %v21 = vld [vmem:[%s1] sm:$0xff]
  %v22 = vld [vmem:[%s1 + $0x8] sm:$0xff]
  %v23 = vld [vmem:[%s2] sm:$0x1]
  %v25 = vperm.slane %v23, 0
  %vm27 = vcmask 130048
  %v29 = vsel %vm27, %v20, 0
  %31 = vmatpush.msra.mxu0 0.0
  %32 = vmatpush.msra.mxu0 0.0
  %33 = vmatpush.msra.mxu0 0.0
  %34 = vmatpush.msra.mxu0 0.0
  %35 = vmatpush.msra.mxu0 0.0
  %36 = vmatpush.msra.mxu0 0.0
  %37 = vmatpush.msra.mxu0 0.0
  %38 = vmatpush.msra.mxu0 0.0
  %39 = vmatpush.msra.mxu0 0.0
  %40 = vmatpush.msra.mxu0 0.0
  %41 = vmatpush.msra.mxu0 0.0
  %42 = vmatpush.msra.mxu0 0.0
  %43 = vmatpush.msra.mxu0 0.0
  %44 = vmatpush.msra.mxu0 0.0
  %45 = vmatpush.msra.mxu0 %v22
  %46 = vmatpush.msra.mxu0 %v21
  %47 = vmatmul.f32.gmra.mxu0 %v29
  %v48 = vpop.f32.mrf.mxu0
  %v49 = vadd.f32 %v25, %v48
  %50 = vdwg.mxu0
  %v51 = vmax.f32 %v49, 0.0
  %v52 = vld [vmem:[%s3] sm:$0xff]
  %v53 = vld [vmem:[%s3 + $0x8] sm:$0xff]
  %v54 = vld [vmem:[%s3 + $0x10] sm:$0xff]
  %v55 = vld [vmem:[%s3 + $0x18] sm:$0xff]
  %v56 = vld [vmem:[%s3 + $0x20] sm:$0xff]
  %v57 = vld [vmem:[%s3 + $0x28] sm:$0xff]
  %v58 = vld [vmem:[%s3 + $0x30] sm:$0xff]
  %v59 = vld [vmem:[%s3 + $0x38] sm:$0xff]
  %v60 = vld [vmem:[%s4] sm:$0x1]
  %v62 = vperm.slane %v60, 0
  %vm64 = vcmask 523264
  %v66 = vsel %vm64, %v51, 0
  %68 = vmatpush.msra.mxu0 0.0
  %69 = vmatpush.msra.mxu0 0.0
  %70 = vmatpush.msra.mxu0 0.0
  %71 = vmatpush.msra.mxu0 0.0
  %72 = vmatpush.msra.mxu0 0.0
  %73 = vmatpush.msra.mxu0 0.0
  %74 = vmatpush.msra.mxu0 0.0
  %75 = vmatpush.msra.mxu0 0.0
  %76 = vmatpush.msra.mxu0 %v59
  %77 = vmatpush.msra.mxu0 %v58
  %78 = vmatpush.msra.mxu0 %v57
  %79 = vmatpush.msra.mxu0 %v56
  %80 = vmatpush.msra.mxu0 %v55
  %81 = vmatpush.msra.mxu0 %v54
  %82 = vmatpush.msra.mxu0 %v53
  %83 = vmatpush.msra.mxu0 %v52
  %84 = vmatmul.f32.gmra.mxu0 %v66
  %v85 = vpop.f32.mrf.mxu0
  %v86 = vadd.f32 %v62, %v85
  %87 = vdwg.mxu0
  %vm88 = vcmask 31744
  %v89 = vsel %vm88, %v86, -inf
  %90 = vmax.xlane.f32.xlu0 %v89
  %v91 = vpop.xlane.xlu0 %90
  %v92 = vsub.f32 %v86, %v91
  %v93 = vmul.f32 %v92, 1.442695
  %v94 = vpow.pop %v93
  %v95 = vsel %vm88, %v94, 0.0
  %96 = vadd.xlane.f32.xlu0 %v95
  %v97 = vpop.xlane.xlu0 %96
  %v98 = vrcp.pop %v97
  %v99 = vmul.f32 %v97, %v98
  %v100 = vsub.f32 1.0, %v99
  %v101 = vmul.f32 %v98, %v100
  %v102 = vadd.f32 %v98, %v101
  %vm103 = vweird.f32 %v97
  %vm104 = vweird.f32 %v98
  %vm105 = vmor %vm103, %vm104
  %v106 = vsel %vm105, %v98, %v102
  %v107 = vand.u32 2147483647, %v97
  %vm108 = vcmp.eq.f32.partialorder %v107, 8.507059e+37
  %v109 = vand.u32 %v97, 2147483648
  %v110 = vor.u32 1.1754944e-38, %v109
  %v111 = vsel %vm108, %v110, %v106
  %v112 = vmul.f32 %v94, %v111
  %113 = vst.msk [vmem:[%s5] sm:$0xff] %vm88, %v112
  // Predicated region
  $region22: #{tpu_custom_call.1} parent=0 // pred_check
    _
  $region23: #{tpu_custom_call.1} parent=0 // pred_check_branch
    %115 = sbr.rel (0) target = $region25
  $region24: #{tpu_custom_call.1} parent=0 // pred_region
    _
  $region25: #{tpu_custom_call.1} parent=0 // pred_fallthru
    _
  // Predicated region
  $region26: #{tpu_custom_call.1} parent=0 // pred_check
    _
  $region27: #{tpu_custom_call.1} parent=0 // pred_check_branch
    %117 = sbr.rel (0) target = $region29
  $region28: #{tpu_custom_call.1} parent=0 // pred_region
    _
  $region29: #{tpu_custom_call.1} parent=0 // pred_fallthru
    _

</llo_original>
